<compile_context>
chip_gen: v7x
topology: tpu7x:2x2x1
jax: 0.10.0
libtpu: 0.0.40
codegen_flags: <defaults>
</compile_context>

<pallas_src>
import jax
import jax.numpy as jnp
from jax import lax
from jax.experimental import pallas as pl
from jax.experimental.pallas import tpu as pltpu

EPS = 1e-5


# ----------------------------------------------------------------------------
# Kernel: one grid step = one full independent batch (BN statistics need the
# whole batch, so the batch is never split across grid steps).
# ----------------------------------------------------------------------------
def _critic_kernel(state_ref, action_ref,
                   w1_ref,
                   wmx_ref, wma_ref, bm_ref,
                   w2_ref, b2_ref,
                   w3t_ref, b3_ref,
                   out_ref):
    def bn_norm(x):
        # Training-mode BN normalization (affine already folded into the next
        # Linear).  Single-pass variance: E[x^2] - mean^2 (biased, like torch).
        mean = jnp.mean(x, axis=0, keepdims=True)
        var = jnp.mean(x * x, axis=0, keepdims=True) - mean * mean
        var = jnp.maximum(var, 0.0)          # guard fp cancellation
        return (x - mean) * lax.rsqrt(var + EPS)

    state = state_ref[...]                   # (B, S)
    action = action_ref[...]                 # (B, A)

    # x = relu(fc1(state)) ; x = bn1(x)   [affine folded into wm_x / bm]
    x = jnp.maximum(
        jnp.dot(state, w1_ref[...], preferred_element_type=jnp.float32), 0.0)
    x = bn_norm(x)

    # x = cat(x, action) ; x = relu(fc_merged(x)) ; x = bn_merged(x)
    # (two dots == one matmul on the concatenated input; v7x MRB accumulates)
    h = (jnp.dot(x, wmx_ref[...], preferred_element_type=jnp.float32)
         + jnp.dot(action, wma_ref[...], preferred_element_type=jnp.float32)
         + bm_ref[...])
    x = bn_norm(jnp.maximum(h, 0.0))

    # x = relu(fc2(x)) ; x = bn2(x)   [affine folded into w3 / b3]
    x = jnp.maximum(
        jnp.dot(x, w2_ref[...], preferred_element_type=jnp.float32)
        + b2_ref[...], 0.0)
    x = bn_norm(x)

    # x = fc3(x): N=1 output -> VPU multiply + lane reduce instead of MXU.
    out_ref[...] = (jnp.sum(x * w3t_ref[...], axis=1, keepdims=True)
                    + b3_ref[...])


# ----------------------------------------------------------------------------
# One-time parameter preprocessing: fold each BN's gamma/beta into the next
# Linear's weight and bias (pure constant folding on weights).
# ----------------------------------------------------------------------------
def fold_bn_params(p):
    wmx = p["g1"].reshape(-1, 1) * p["wm_x"]
    bm = p["bm"] + p["be1"] @ p["wm_x"]
    w2 = p["gm"].reshape(-1, 1) * p["w2"]
    b2 = p["b2"] + p["bem"] @ p["w2"]
    w3 = p["g2"].reshape(-1, 1) * p["w3"]
    b3 = p["b3"] + p["be2"] @ p["w3"]
    return dict(w1=p["w1"],
                wm_x=wmx, wm_a=p["wm_a"], bm=bm,
                w2=w2, b2=b2,
                w3t=w3.T,            # (1, FC3): used as a VPU row-vector
                b3=b3)


# ----------------------------------------------------------------------------
# Wrapper.  Accepts a single batch (B, S)/(B, A) or a stack of E independent
# batches (E, B, S)/(E, B, A); the stack axis becomes the (parallel) grid.
# `params` must be the output of fold_bn_params().
# ----------------------------------------------------------------------------
def critic4_forward(state, action, params):
    squeeze = state.ndim == 2
    if squeeze:
        state = state[None]
        action = action[None]
    E, B, S = state.shape
    A = action.shape[-1]
    FC1 = params["w1"].shape[1]
    FC2 = params["wm_x"].shape[1]
    FC3 = params["w2"].shape[1]

    param_list = (params["w1"],
                  params["wm_x"], params["wm_a"], params["bm"],
                  params["w2"], params["b2"],
                  params["w3t"], params["b3"])

    in_specs = [
        pl.BlockSpec((None, B, S), lambda e: (e, 0, 0)),
        pl.BlockSpec((None, B, A), lambda e: (e, 0, 0)),
    ] + [pl.BlockSpec(w.shape, lambda e: (0, 0)) for w in param_list]

    flops = 2 * E * B * (S * FC1 + (FC1 + A) * FC2 + FC2 * FC3 + FC3)
    transcendentals = E * (FC1 + FC2 + FC3)          # rsqrt per BN feature
    bytes_accessed = (
        sum(int(w.size) for w in param_list) * 4
        + (state.size + action.size + E * B) * 4)

    out = pl.pallas_call(
        _critic_kernel,
        out_shape=jax.ShapeDtypeStruct((E, B, 1), jnp.float32),
        grid_spec=pltpu.PrefetchScalarGridSpec(
            num_scalar_prefetch=0,
            grid=(E,),
            in_specs=in_specs,
            out_specs=pl.BlockSpec((None, B, 1), lambda e: (e, 0, 0)),
        ),
        compiler_params=pltpu.CompilerParams(
            dimension_semantics=("parallel",)),
        cost_estimate=pl.CostEstimate(
            flops=flops,
            transcendentals=transcendentals,
            bytes_accessed=bytes_accessed),
    )(state, action, *param_list)
    return out[0] if squeeze else out


# ----------------------------------------------------------------------------
# Deterministic init mirroring Critic4.reset_parameters (weights transposed to
# (in, out)).  Linear biases use the PyTorch default uniform(+-1/sqrt(fan_in));
# fc3.weight uses uniform(-3e-3, 3e-3); BN gamma=1, beta=0 (fresh module).
# ----------------------------------------------------------------------------
def init_params(key, state_size, action_size, fc1_units, fc2_units):
    fc3_units = fc2_units
    ks = jax.random.split(key, 8)

    def u(k, shape, bound):
        return jax.random.uniform(k, shape, jnp.float32, -bound, bound)

    f1 = 1.0 / jnp.sqrt(jnp.float32(state_size))
    fm = 1.0 / jnp.sqrt(jnp.float32(fc1_units + action_size))
    f2 = 1.0 / jnp.sqrt(jnp.float32(fc2_units))

    w_merged = u(ks[1], (fc1_units + action_size, fc2_units), fm)
    return dict(
        w1=u(ks[0], (state_size, fc1_units), f1),
        wm_x=w_merged[:fc1_units, :],
        wm_a=w_merged[fc1_units:, :],
        bm=u(ks[2], (1, fc2_units), fm),
        w2=u(ks[3], (fc2_units, fc3_units), f2),
        b2=u(ks[4], (1, fc3_units), f2),
        w3=u(ks[5], (fc3_units, 1), 0.003),      # uniform(-3*0.001, 0.003)
        b3=u(ks[6], (1, 1), 1.0 / jnp.sqrt(jnp.float32(fc3_units))),
        g1=jnp.ones((1, fc1_units), jnp.float32),
        be1=jnp.zeros((1, fc1_units), jnp.float32),
        gm=jnp.ones((1, fc2_units), jnp.float32),
        bem=jnp.zeros((1, fc2_units), jnp.float32),
        g2=jnp.ones((1, fc3_units), jnp.float32),
        be2=jnp.zeros((1, fc3_units), jnp.float32),
    )


# ----------------------------------------------------------------------------
# Pure-JAX reference in the original (unfolded) module form.
# ----------------------------------------------------------------------------
def _reference(state, action, p):
    def bn(x, g, b):
        m = jnp.mean(x, axis=0, keepdims=True)
        v = jnp.mean((x - m) ** 2, axis=0, keepdims=True)
        return (x - m) / jnp.sqrt(v + EPS) * g + b

    x = jnp.maximum(state @ p["w1"], 0.0)
    x = bn(x, p["g1"], p["be1"])
    x = jnp.maximum(x @ p["wm_x"] + action @ p["wm_a"] + p["bm"], 0.0)
    x = bn(x, p["gm"], p["bem"])
    x = jnp.maximum(x @ p["w2"] + p["b2"], 0.0)
    x = bn(x, p["g2"], p["be2"])
    return x @ p["w3"] + p["b3"]


if __name__ == "__main__":
    E, B, STATE, ACTION = 4, 8, 24, 4     # E independent stacked batches
    FC1, FC2 = 64, 32

    key = jax.random.PRNGKey(0)
    k_state, k_action, k_params = jax.random.split(key, 3)
    state = jax.random.normal(k_state, (E, B, STATE), jnp.float32)
    action = jax.random.normal(k_action, (E, B, ACTION), jnp.float32)

    params = init_params(k_params, STATE, ACTION, FC1, FC2)
    folded = fold_bn_params(params)        # one-time weight preprocessing

    # Stacked path: one pallas_call, grid over the E independent batches.
    out = jax.block_until_ready(critic4_forward(state, action, folded))
    ref = jax.vmap(lambda s, a: _reference(s, a, params))(state, action)
    assert out.shape == (E, B, 1)
    assert jnp.allclose(out, ref, atol=1e-4, rtol=1e-4)

    # Single-batch path (matches the original module's forward signature).
    out1 = jax.block_until_ready(critic4_forward(state[0], action[0], folded))
    assert out1.shape == (B, 1)
    assert jnp.allclose(out1, _reference(state[0], action[0], params),
                        atol=1e-4, rtol=1e-4)

    print("KERNEL_OK")
</pallas_src>

<mosaic_0001>
module attributes {stable_mosaic.version = 11 : i64} {
  func.func @_critic_kernel(%arg0: i32, %arg1: memref<1x8x24xf32, #tpu.memory_space<vmem>>, %arg2: memref<1x8x4xf32, #tpu.memory_space<vmem>>, %arg3: memref<24x64xf32, #tpu.memory_space<vmem>>, %arg4: memref<64x32xf32, #tpu.memory_space<vmem>>, %arg5: memref<4x32xf32, #tpu.memory_space<vmem>>, %arg6: memref<1x32xf32, #tpu.memory_space<vmem>>, %arg7: memref<32x32xf32, #tpu.memory_space<vmem>>, %arg8: memref<1x32xf32, #tpu.memory_space<vmem>>, %arg9: memref<1x32xf32, #tpu.memory_space<vmem>>, %arg10: memref<1x1xf32, #tpu.memory_space<vmem>>, %arg11: memref<1x8x1xf32, #tpu.memory_space<vmem>>) attributes {dimension_semantics = [#tpu.dimension_semantics<parallel>], iteration_bounds = array<i64: 4>, scalar_prefetch = 0 : i64, scratch_operands = 0 : i64, tpu.core_type = #tpu.core_type<tc>, window_params = [{transform_indices = @transform_0, window_bounds = array<i64: 1, 8, 24>}, {transform_indices = @transform_1, window_bounds = array<i64: 1, 8, 4>}, {pipeline_mode = #tpu.pipeline_mode<synchronous>, transform_indices = @transform_2, window_bounds = array<i64: 24, 64>}, {pipeline_mode = #tpu.pipeline_mode<synchronous>, transform_indices = @transform_3, window_bounds = array<i64: 64, 32>}, {pipeline_mode = #tpu.pipeline_mode<synchronous>, transform_indices = @transform_4, window_bounds = array<i64: 4, 32>}, {pipeline_mode = #tpu.pipeline_mode<synchronous>, transform_indices = @transform_5, window_bounds = array<i64: 1, 32>}, {pipeline_mode = #tpu.pipeline_mode<synchronous>, transform_indices = @transform_6, window_bounds = array<i64: 32, 32>}, {pipeline_mode = #tpu.pipeline_mode<synchronous>, transform_indices = @transform_7, window_bounds = array<i64: 1, 32>}, {pipeline_mode = #tpu.pipeline_mode<synchronous>, transform_indices = @transform_8, window_bounds = array<i64: 1, 32>}, {pipeline_mode = #tpu.pipeline_mode<synchronous>, transform_indices = @transform_9, window_bounds = array<i64: 1, 1>}, {transform_indices = @transform_10, window_bounds = array<i64: 1, 8, 1>}]} {
    %c0 = arith.constant 0 : index
    %c0_0 = arith.constant 0 : index
    %c0_1 = arith.constant 0 : index
    %0 = vector.load %arg1[%c0, %c0_0, %c0_1] : memref<1x8x24xf32, #tpu.memory_space<vmem>>, vector<1x8x24xf32>
    %1 = vector.shape_cast %0 : vector<1x8x24xf32> to vector<8x24xf32>
    %c0_2 = arith.constant 0 : index
    %c0_3 = arith.constant 0 : index
    %c0_4 = arith.constant 0 : index
    %2 = vector.load %arg2[%c0_2, %c0_3, %c0_4] : memref<1x8x4xf32, #tpu.memory_space<vmem>>, vector<1x8x4xf32>
    %3 = vector.shape_cast %2 : vector<1x8x4xf32> to vector<8x4xf32>
    %c0_5 = arith.constant 0 : index
    %c0_6 = arith.constant 0 : index
    %4 = vector.load %arg3[%c0_5, %c0_6] : memref<24x64xf32, #tpu.memory_space<vmem>>, vector<24x64xf32>
    %cst = arith.constant dense<0.000000e+00> : vector<8x64xf32>
    %5 = tpu.matmul %1, %4, %cst {dimension_numbers = #tpu.dot_dimension_numbers<[1], [0], [0], [1], [0, 0, 1, 1], [], []>} : vector<8x24xf32>, vector<24x64xf32>, vector<8x64xf32> -> vector<8x64xf32>
    %cst_7 = arith.constant 0.000000e+00 : f32
    %6 = vector.broadcast %cst_7 : f32 to vector<8x64xf32>
    %7 = arith.maximumf %5, %6 : vector<8x64xf32>
    %cst_8 = arith.constant dense<0.000000e+00> : vector<64xf32>
    %8 = vector.multi_reduction <add>, %7, %cst_8 [0] : vector<8x64xf32> to vector<64xf32>
    %9 = vector.shape_cast %8 : vector<64xf32> to vector<1x64xf32>
    %cst_9 = arith.constant 8.000000e+00 : f32
    %10 = vector.broadcast %cst_9 : f32 to vector<1x64xf32>
    %11 = arith.divf %9, %10 : vector<1x64xf32>
    %12 = arith.mulf %7, %7 : vector<8x64xf32>
    %cst_10 = arith.constant dense<0.000000e+00> : vector<64xf32>
    %13 = vector.multi_reduction <add>, %12, %cst_10 [0] : vector<8x64xf32> to vector<64xf32>
    %14 = vector.shape_cast %13 : vector<64xf32> to vector<1x64xf32>
    %cst_11 = arith.constant 8.000000e+00 : f32
    %15 = vector.broadcast %cst_11 : f32 to vector<1x64xf32>
    %16 = arith.divf %14, %15 : vector<1x64xf32>
    %17 = arith.mulf %11, %11 : vector<1x64xf32>
    %18 = arith.subf %16, %17 : vector<1x64xf32>
    %cst_12 = arith.constant 0.000000e+00 : f32
    %19 = vector.broadcast %cst_12 : f32 to vector<1x64xf32>
    %20 = arith.maximumf %18, %19 : vector<1x64xf32>
    %21 = vector.broadcast %11 : vector<1x64xf32> to vector<8x64xf32>
    %22 = arith.subf %7, %21 : vector<8x64xf32>
    %cst_13 = arith.constant 9.99999974E-6 : f32
    %23 = vector.broadcast %cst_13 : f32 to vector<1x64xf32>
    %24 = arith.addf %20, %23 : vector<1x64xf32>
    %25 = math.rsqrt %24 : vector<1x64xf32>
    %26 = vector.broadcast %25 : vector<1x64xf32> to vector<8x64xf32>
    %27 = arith.mulf %22, %26 : vector<8x64xf32>
    %c0_14 = arith.constant 0 : index
    %c0_15 = arith.constant 0 : index
    %28 = vector.load %arg4[%c0_14, %c0_15] : memref<64x32xf32, #tpu.memory_space<vmem>>, vector<64x32xf32>
    %cst_16 = arith.constant dense<0.000000e+00> : vector<8x32xf32>
    %29 = tpu.matmul %27, %28, %cst_16 {dimension_numbers = #tpu.dot_dimension_numbers<[1], [0], [0], [1], [0, 0, 1, 1], [], []>} : vector<8x64xf32>, vector<64x32xf32>, vector<8x32xf32> -> vector<8x32xf32>
    %c0_17 = arith.constant 0 : index
    %c0_18 = arith.constant 0 : index
    %30 = vector.load %arg5[%c0_17, %c0_18] : memref<4x32xf32, #tpu.memory_space<vmem>>, vector<4x32xf32>
    %cst_19 = arith.constant dense<0.000000e+00> : vector<8x32xf32>
    %31 = tpu.matmul %3, %30, %cst_19 {dimension_numbers = #tpu.dot_dimension_numbers<[1], [0], [0], [1], [0, 0, 1, 1], [], []>} : vector<8x4xf32>, vector<4x32xf32>, vector<8x32xf32> -> vector<8x32xf32>
    %32 = arith.addf %29, %31 : vector<8x32xf32>
    %c0_20 = arith.constant 0 : index
    %c0_21 = arith.constant 0 : index
    %33 = vector.load %arg6[%c0_20, %c0_21] : memref<1x32xf32, #tpu.memory_space<vmem>>, vector<1x32xf32>
    %34 = vector.broadcast %33 : vector<1x32xf32> to vector<8x32xf32>
    %35 = arith.addf %32, %34 : vector<8x32xf32>
    %cst_22 = arith.constant 0.000000e+00 : f32
    %36 = vector.broadcast %cst_22 : f32 to vector<8x32xf32>
    %37 = arith.maximumf %35, %36 : vector<8x32xf32>
    %cst_23 = arith.constant dense<0.000000e+00> : vector<32xf32>
    %38 = vector.multi_reduction <add>, %37, %cst_23 [0] : vector<8x32xf32> to vector<32xf32>
    %39 = vector.shape_cast %38 : vector<32xf32> to vector<1x32xf32>
    %cst_24 = arith.constant 8.000000e+00 : f32
    %40 = vector.broadcast %cst_24 : f32 to vector<1x32xf32>
    %41 = arith.divf %39, %40 : vector<1x32xf32>
    %42 = arith.mulf %37, %37 : vector<8x32xf32>
    %cst_25 = arith.constant dense<0.000000e+00> : vector<32xf32>
    %43 = vector.multi_reduction <add>, %42, %cst_25 [0] : vector<8x32xf32> to vector<32xf32>
    %44 = vector.shape_cast %43 : vector<32xf32> to vector<1x32xf32>
    %cst_26 = arith.constant 8.000000e+00 : f32
    %45 = vector.broadcast %cst_26 : f32 to vector<1x32xf32>
    %46 = arith.divf %44, %45 : vector<1x32xf32>
    %47 = arith.mulf %41, %41 : vector<1x32xf32>
    %48 = arith.subf %46, %47 : vector<1x32xf32>
    %cst_27 = arith.constant 0.000000e+00 : f32
    %49 = vector.broadcast %cst_27 : f32 to vector<1x32xf32>
    %50 = arith.maximumf %48, %49 : vector<1x32xf32>
    %51 = vector.broadcast %41 : vector<1x32xf32> to vector<8x32xf32>
    %52 = arith.subf %37, %51 : vector<8x32xf32>
    %cst_28 = arith.constant 9.99999974E-6 : f32
    %53 = vector.broadcast %cst_28 : f32 to vector<1x32xf32>
    %54 = arith.addf %50, %53 : vector<1x32xf32>
    %55 = math.rsqrt %54 : vector<1x32xf32>
    %56 = vector.broadcast %55 : vector<1x32xf32> to vector<8x32xf32>
    %57 = arith.mulf %52, %56 : vector<8x32xf32>
    %c0_29 = arith.constant 0 : index
    %c0_30 = arith.constant 0 : index
    %58 = vector.load %arg7[%c0_29, %c0_30] : memref<32x32xf32, #tpu.memory_space<vmem>>, vector<32x32xf32>
    %cst_31 = arith.constant dense<0.000000e+00> : vector<8x32xf32>
    %59 = tpu.matmul %57, %58, %cst_31 {dimension_numbers = #tpu.dot_dimension_numbers<[1], [0], [0], [1], [0, 0, 1, 1], [], []>} : vector<8x32xf32>, vector<32x32xf32>, vector<8x32xf32> -> vector<8x32xf32>
    %c0_32 = arith.constant 0 : index
    %c0_33 = arith.constant 0 : index
    %60 = vector.load %arg8[%c0_32, %c0_33] : memref<1x32xf32, #tpu.memory_space<vmem>>, vector<1x32xf32>
    %61 = vector.broadcast %60 : vector<1x32xf32> to vector<8x32xf32>
    %62 = arith.addf %59, %61 : vector<8x32xf32>
    %cst_34 = arith.constant 0.000000e+00 : f32
    %63 = vector.broadcast %cst_34 : f32 to vector<8x32xf32>
    %64 = arith.maximumf %62, %63 : vector<8x32xf32>
    %cst_35 = arith.constant dense<0.000000e+00> : vector<32xf32>
    %65 = vector.multi_reduction <add>, %64, %cst_35 [0] : vector<8x32xf32> to vector<32xf32>
    %66 = vector.shape_cast %65 : vector<32xf32> to vector<1x32xf32>
    %cst_36 = arith.constant 8.000000e+00 : f32
    %67 = vector.broadcast %cst_36 : f32 to vector<1x32xf32>
    %68 = arith.divf %66, %67 : vector<1x32xf32>
    %69 = arith.mulf %64, %64 : vector<8x32xf32>
    %cst_37 = arith.constant dense<0.000000e+00> : vector<32xf32>
    %70 = vector.multi_reduction <add>, %69, %cst_37 [0] : vector<8x32xf32> to vector<32xf32>
    %71 = vector.shape_cast %70 : vector<32xf32> to vector<1x32xf32>
    %cst_38 = arith.constant 8.000000e+00 : f32
    %72 = vector.broadcast %cst_38 : f32 to vector<1x32xf32>
    %73 = arith.divf %71, %72 : vector<1x32xf32>
    %74 = arith.mulf %68, %68 : vector<1x32xf32>
    %75 = arith.subf %73, %74 : vector<1x32xf32>
    %cst_39 = arith.constant 0.000000e+00 : f32
    %76 = vector.broadcast %cst_39 : f32 to vector<1x32xf32>
    %77 = arith.maximumf %75, %76 : vector<1x32xf32>
    %78 = vector.broadcast %68 : vector<1x32xf32> to vector<8x32xf32>
    %79 = arith.subf %64, %78 : vector<8x32xf32>
    %cst_40 = arith.constant 9.99999974E-6 : f32
    %80 = vector.broadcast %cst_40 : f32 to vector<1x32xf32>
    %81 = arith.addf %77, %80 : vector<1x32xf32>
    %82 = math.rsqrt %81 : vector<1x32xf32>
    %83 = vector.broadcast %82 : vector<1x32xf32> to vector<8x32xf32>
    %84 = arith.mulf %79, %83 : vector<8x32xf32>
    %c0_41 = arith.constant 0 : index
    %c0_42 = arith.constant 0 : index
    %85 = vector.load %arg9[%c0_41, %c0_42] : memref<1x32xf32, #tpu.memory_space<vmem>>, vector<1x32xf32>
    %86 = vector.broadcast %85 : vector<1x32xf32> to vector<8x32xf32>
    %87 = arith.mulf %84, %86 : vector<8x32xf32>
    %cst_43 = arith.constant dense<0.000000e+00> : vector<8xf32>
    %88 = vector.multi_reduction <add>, %87, %cst_43 [1] : vector<8x32xf32> to vector<8xf32>
    %89 = vector.shape_cast %88 : vector<8xf32> to vector<8x1xf32>
    %c0_44 = arith.constant 0 : index
    %c0_45 = arith.constant 0 : index
    %90 = vector.load %arg10[%c0_44, %c0_45] : memref<1x1xf32, #tpu.memory_space<vmem>>, vector<1x1xf32>
    %91 = vector.broadcast %90 : vector<1x1xf32> to vector<8x1xf32>
    %92 = arith.addf %89, %91 : vector<8x1xf32>
    %c0_46 = arith.constant 0 : index
    %c0_47 = arith.constant 0 : index
    %c0_48 = arith.constant 0 : index
    %93 = vector.load %arg11[%c0_46, %c0_47, %c0_48] : memref<1x8x1xf32, #tpu.memory_space<vmem>>, vector<1x8x1xf32>
    %94 = vector.shape_cast %93 : vector<1x8x1xf32> to vector<8x1xf32>
    %95 = vector.shape_cast %92 : vector<8x1xf32> to vector<1x8x1xf32>
    tpu.vector_store %arg11[%c0_46, %c0_47, %c0_48], %95 {strides = array<i32>} : memref<1x8x1xf32, #tpu.memory_space<vmem>>, vector<1x8x1xf32>,
    return
  }
  func.func @transform_0(%arg0: i32) -> (i32, i32, i32) {
    %c0_i32 = arith.constant 0 : i32
    %c0_i32_0 = arith.constant 0 : i32
    %c0_i32_1 = arith.constant 0 : i32
    return %arg0, %c0_i32, %c0_i32_0 : i32, i32, i32
  }
  func.func @transform_1(%arg0: i32) -> (i32, i32, i32) {
    %c0_i32 = arith.constant 0 : i32
    %c0_i32_0 = arith.constant 0 : i32
    %c0_i32_1 = arith.constant 0 : i32
    return %arg0, %c0_i32, %c0_i32_0 : i32, i32, i32
  }
  func.func @transform_2(%arg0: i32) -> (i32, i32) {
    %c0_i32 = arith.constant 0 : i32
    %c0_i32_0 = arith.constant 0 : i32
    %c0_i32_1 = arith.constant 0 : i32
    return %c0_i32, %c0_i32_0 : i32, i32
  }
  func.func @transform_3(%arg0: i32) -> (i32, i32) {
    %c0_i32 = arith.constant 0 : i32
    %c0_i32_0 = arith.constant 0 : i32
    %c0_i32_1 = arith.constant 0 : i32
    return %c0_i32, %c0_i32_0 : i32, i32
  }
  func.func @transform_4(%arg0: i32) -> (i32, i32) {
    %c0_i32 = arith.constant 0 : i32
    %c0_i32_0 = arith.constant 0 : i32
    %c0_i32_1 = arith.constant 0 : i32
    return %c0_i32, %c0_i32_0 : i32, i32
  }
  func.func @transform_5(%arg0: i32) -> (i32, i32) {
    %c0_i32 = arith.constant 0 : i32
    %c0_i32_0 = arith.constant 0 : i32
    %c0_i32_1 = arith.constant 0 : i32
    return %c0_i32, %c0_i32_0 : i32, i32
  }
  func.func @transform_6(%arg0: i32) -> (i32, i32) {
    %c0_i32 = arith.constant 0 : i32
    %c0_i32_0 = arith.constant 0 : i32
    %c0_i32_1 = arith.constant 0 : i32
    return %c0_i32, %c0_i32_0 : i32, i32
  }
  func.func @transform_7(%arg0: i32) -> (i32, i32) {
    %c0_i32 = arith.constant 0 : i32
    %c0_i32_0 = arith.constant 0 : i32
    %c0_i32_1 = arith.constant 0 : i32
    return %c0_i32, %c0_i32_0 : i32, i32
  }
  func.func @transform_8(%arg0: i32) -> (i32, i32) {
    %c0_i32 = arith.constant 0 : i32
    %c0_i32_0 = arith.constant 0 : i32
    %c0_i32_1 = arith.constant 0 : i32
    return %c0_i32, %c0_i32_0 : i32, i32
  }
  func.func @transform_9(%arg0: i32) -> (i32, i32) {
    %c0_i32 = arith.constant 0 : i32
    %c0_i32_0 = arith.constant 0 : i32
    %c0_i32_1 = arith.constant 0 : i32
    return %c0_i32, %c0_i32_0 : i32, i32
  }
  func.func @transform_10(%arg0: i32) -> (i32, i32, i32) {
    %c0_i32 = arith.constant 0 : i32
    %c0_i32_0 = arith.constant 0 : i32
    %c0_i32_1 = arith.constant 0 : i32
    return %arg0, %c0_i32, %c0_i32_0 : i32, i32, i32
  }
}

</mosaic_0001>

<llo_original>
// kernel: tpu_custom_call.1
$region0: #{tpu_custom_call.1}
  #allocation0 [shape = 'u32[]', space=smem, size = 0x4, offset = 0x4, fixed_abs, tag = 'smem constant byte address 0x4 - core index']
  #allocation1 [shape = 'u32[144,128]{1,0:T(1,128)}', space=vmem, size = 0x12000, scoped, tag = 'internal scratch']
  #allocation2 [shape = 'f32[1,1]{1,0:T(1,128)S(1)}', space=vmem, size = 0x200, scoped, tag = 'scoped memory for tpu_custom_call.1']
  %s0 = inlined_call_operand.vmem [shape: f32[4,8,24], index: 0, kind: input, shape index: {}]
  %s1 = inlined_call_operand.vmem [shape: f32[4,8,4], index: 1, kind: input, shape index: {}]
  %s2 = inlined_call_operand.vmem [shape: f32[24,64], index: 2, kind: input, shape index: {}]
  %s3 = inlined_call_operand.vmem [shape: f32[64,32], index: 3, kind: input, shape index: {}]
  %s4 = inlined_call_operand.vmem [shape: f32[4,32], index: 4, kind: input, shape index: {}]
  %s5 = inlined_call_operand.vmem [shape: f32[1,32], index: 5, kind: input, shape index: {}]
  %s6 = inlined_call_operand.vmem [shape: f32[32,32], index: 6, kind: input, shape index: {}]
  %s7 = inlined_call_operand.vmem [shape: f32[1,32], index: 7, kind: input, shape index: {}]
  %s8 = inlined_call_operand.vmem [shape: f32[1,32], index: 8, kind: input, shape index: {}]
  %s9 = inlined_call_operand.<no memory space> [shape: f32[1,1], index: 9, kind: input, shape index: {}]
  %s10 = inlined_call_operand.vmem [shape: f32[4,8,1], index: 10, kind: output, shape index: {}]
  %s11 = sld [smem:[#allocation0]]
  $region73: #{tpu_custom_call.1} parent=0
    _
  %s13 = ssub.s32 1, %s11
  %s14 = scalar_select 0, %s13, %s11
  %v15 = vstv %s9
  %16 = vst [vmem:[#allocation2] sm:$0x1] %v15
  loop: start=0, step=1, limit=6
  $region2: #{tpu_custom_call.1} parent=0 // loop_pre_header
    _
  $region3: #{tpu_custom_call.1} parent=0 // loop_header
    %s18 = sphi 0, %s22
    %p19 = scmp.ge.s32.totalorder %s18, 6
    %s28 = sphi 0, %s30
    %s31 = sphi 0, %s28
    %s32 = sphi 0, %s31
    %s48 = sphi 0, %s32
    %s54 = sphi 0, %s56
    %s57 = sphi 0, %s54
    %s58 = sphi 0, %s57
    %s74 = sphi 0, %s58
    %s78 = sphi 0, %s78
    %s80 = sphi 0, %s78
    %s81 = sphi 0, %s80
    %s95 = sphi 0, %s81
    %s99 = sphi 0, %s99
    %s101 = sphi 0, %s99
    %s102 = sphi 0, %s101
    %s116 = sphi 0, %s102
    %s120 = sphi 0, %s120
    %s122 = sphi 0, %s120
    %s123 = sphi 0, %s122
    %s137 = sphi 0, %s123
    %s141 = sphi 0, %s141
    %s143 = sphi 0, %s141
    %s144 = sphi 0, %s143
    %s158 = sphi 0, %s144
    %s162 = sphi 0, %s162
    %s164 = sphi 0, %s162
    %s165 = sphi 0, %s164
    %s179 = sphi 0, %s165
    %s183 = sphi 0, %s183
    %s185 = sphi 0, %s183
    %s186 = sphi 0, %s185
    %s200 = sphi 0, %s186
    %s204 = sphi 0, %s204
    %s206 = sphi 0, %s204
    %s207 = sphi 0, %s206
    %s221 = sphi 0, %s207
    %s225 = sphi 0, %s225
    %s227 = sphi 0, %s225
    %s228 = sphi 0, %s227
    %s242 = sphi 0, %s228
    %s248 = sphi 0, %s250
    %s251 = sphi 0, %s248
    %s252 = sphi 0, %s251
    %s268 = sphi 0, %s252
  $region4: #{tpu_custom_call.1} parent=0 // loop_header_branch
    %21 = sbr.rel (%p19) target = $region8
  $region5: #{tpu_custom_call.1} parent=0 // loop_body
    %s23 = ssub.s32 %s18, 1
    %s24 = ssub.s32 %s18, 2
    %s25 = sadd.s32 %s18, 1
    %s26 = ssub.s32 %s18, %s25
    %p27 = scmp.eq.s32.totalorder %s26, 0
    %s29 = sadd.s32 %s28, 1
    %s30 = scalar_select %p27, %s28, %s29
    %p33 = pneg %p27
    %p34 = scmp.eq.s32.totalorder %s18, 3
    %p35 = por %p33, %p34
    %p36 = scmp.ne.s32.totalorder %s28, %s31
    %p37 = scmp.eq.s32.totalorder %s18, 0
    %p38 = por %p36, %p37
    %p39 = scmp.ne.s32.totalorder %s28, %s31
    %p40 = scmp.eq.s32.totalorder %s23, 3
    %p41 = por %p39, %p40
    %p42 = scmp.ne.s32.totalorder %s31, %s32
    %p43 = scmp.eq.s32.totalorder %s23, 0
    %p44 = por %p42, %p43
    %p45 = scmp.ne.s32.totalorder %s31, %s32
    %p46 = scmp.eq.s32.totalorder %s24, 3
    %p47 = por %p45, %p46
    %p49 = scmp.ne.s32.totalorder %s32, %s48
    %p50 = scmp.eq.s32.totalorder %s24, 0
    %p51 = por %p49, %p50
    %s52 = ssub.s32 %s18, %s25
    %p53 = scmp.eq.s32.totalorder %s52, 0
    %s55 = sadd.s32 %s54, 1
    %s56 = scalar_select %p53, %s54, %s55
    %p59 = pneg %p53
    %p60 = scmp.eq.s32.totalorder %s18, 3
    %p61 = por %p59, %p60
    %p62 = scmp.ne.s32.totalorder %s54, %s57
    %p63 = scmp.eq.s32.totalorder %s18, 0
    %p64 = por %p62, %p63
    %p65 = scmp.ne.s32.totalorder %s54, %s57
    %p66 = scmp.eq.s32.totalorder %s23, 3
    %p67 = por %p65, %p66
    %p68 = scmp.ne.s32.totalorder %s57, %s58
    %p69 = scmp.eq.s32.totalorder %s23, 0
    %p70 = por %p68, %p69
    %p71 = scmp.ne.s32.totalorder %s57, %s58
    %p72 = scmp.eq.s32.totalorder %s24, 3
    %p73 = por %p71, %p72
    %p75 = scmp.ne.s32.totalorder %s58, %s74
    %p76 = scmp.eq.s32.totalorder %s24, 0
    %p77 = por %p75, %p76
    %s79 = sadd.s32 %s78, 1
    %p82 = scmp.eq.s32.totalorder %s18, 3
    %p83 = scmp.ne.s32.totalorder %s78, %s80
    %p84 = scmp.eq.s32.totalorder %s18, 0
    %p85 = por %p83, %p84
    %p86 = scmp.ne.s32.totalorder %s78, %s80
    %p87 = scmp.eq.s32.totalorder %s23, 3
    %p88 = por %p86, %p87
    %p89 = scmp.ne.s32.totalorder %s80, %s81
    %p90 = scmp.eq.s32.totalorder %s23, 0
    %p91 = por %p89, %p90
    %p92 = scmp.ne.s32.totalorder %s80, %s81
    %p93 = scmp.eq.s32.totalorder %s24, 3
    %p94 = por %p92, %p93
    %p96 = scmp.ne.s32.totalorder %s81, %s95
    %p97 = scmp.eq.s32.totalorder %s24, 0
    %p98 = por %p96, %p97
    %s100 = sadd.s32 %s99, 1
    %p103 = scmp.eq.s32.totalorder %s18, 3
    %p104 = scmp.ne.s32.totalorder %s99, %s101
    %p105 = scmp.eq.s32.totalorder %s18, 0
    %p106 = por %p104, %p105
    %p107 = scmp.ne.s32.totalorder %s99, %s101
    %p108 = scmp.eq.s32.totalorder %s23, 3
    %p109 = por %p107, %p108
    %p110 = scmp.ne.s32.totalorder %s101, %s102
    %p111 = scmp.eq.s32.totalorder %s23, 0
    %p112 = por %p110, %p111
    %p113 = scmp.ne.s32.totalorder %s101, %s102
    %p114 = scmp.eq.s32.totalorder %s24, 3
    %p115 = por %p113, %p114
    %p117 = scmp.ne.s32.totalorder %s102, %s116
    %p118 = scmp.eq.s32.totalorder %s24, 0
    %p119 = por %p117, %p118
    %s121 = sadd.s32 %s120, 1
    %p124 = scmp.eq.s32.totalorder %s18, 3
    %p125 = scmp.ne.s32.totalorder %s120, %s122
    %p126 = scmp.eq.s32.totalorder %s18, 0
    %p127 = por %p125, %p126
    %p128 = scmp.ne.s32.totalorder %s120, %s122
    %p129 = scmp.eq.s32.totalorder %s23, 3
    %p130 = por %p128, %p129
    %p131 = scmp.ne.s32.totalorder %s122, %s123
    %p132 = scmp.eq.s32.totalorder %s23, 0
    %p133 = por %p131, %p132
    %p134 = scmp.ne.s32.totalorder %s122, %s123
    %p135 = scmp.eq.s32.totalorder %s24, 3
    %p136 = por %p134, %p135
    %p138 = scmp.ne.s32.totalorder %s123, %s137
    %p139 = scmp.eq.s32.totalorder %s24, 0
    %p140 = por %p138, %p139
    %s142 = sadd.s32 %s141, 1
    %p145 = scmp.eq.s32.totalorder %s18, 3
    %p146 = scmp.ne.s32.totalorder %s141, %s143
    %p147 = scmp.eq.s32.totalorder %s18, 0
    %p148 = por %p146, %p147
    %p149 = scmp.ne.s32.totalorder %s141, %s143
    %p150 = scmp.eq.s32.totalorder %s23, 3
    %p151 = por %p149, %p150
    %p152 = scmp.ne.s32.totalorder %s143, %s144
    %p153 = scmp.eq.s32.totalorder %s23, 0
    %p154 = por %p152, %p153
    %p155 = scmp.ne.s32.totalorder %s143, %s144
    %p156 = scmp.eq.s32.totalorder %s24, 3
    %p157 = por %p155, %p156
    %p159 = scmp.ne.s32.totalorder %s144, %s158
    %p160 = scmp.eq.s32.totalorder %s24, 0
    %p161 = por %p159, %p160
    %s163 = sadd.s32 %s162, 1
    %p166 = scmp.eq.s32.totalorder %s18, 3
    %p167 = scmp.ne.s32.totalorder %s162, %s164
    %p168 = scmp.eq.s32.totalorder %s18, 0
    %p169 = por %p167, %p168
    %p170 = scmp.ne.s32.totalorder %s162, %s164
    %p171 = scmp.eq.s32.totalorder %s23, 3
    %p172 = por %p170, %p171
    %p173 = scmp.ne.s32.totalorder %s164, %s165
    %p174 = scmp.eq.s32.totalorder %s23, 0
    %p175 = por %p173, %p174
    %p176 = scmp.ne.s32.totalorder %s164, %s165
    %p177 = scmp.eq.s32.totalorder %s24, 3
    %p178 = por %p176, %p177
    %p180 = scmp.ne.s32.totalorder %s165, %s179
    %p181 = scmp.eq.s32.totalorder %s24, 0
    %p182 = por %p180, %p181
    %s184 = sadd.s32 %s183, 1
    %p187 = scmp.eq.s32.totalorder %s18, 3
    %p188 = scmp.ne.s32.totalorder %s183, %s185
    %p189 = scmp.eq.s32.totalorder %s18, 0
    %p190 = por %p188, %p189
    %p191 = scmp.ne.s32.totalorder %s183, %s185
    %p192 = scmp.eq.s32.totalorder %s23, 3
    %p193 = por %p191, %p192
    %p194 = scmp.ne.s32.totalorder %s185, %s186
    %p195 = scmp.eq.s32.totalorder %s23, 0
    %p196 = por %p194, %p195
    %p197 = scmp.ne.s32.totalorder %s185, %s186
    %p198 = scmp.eq.s32.totalorder %s24, 3
    %p199 = por %p197, %p198
    %p201 = scmp.ne.s32.totalorder %s186, %s200
    %p202 = scmp.eq.s32.totalorder %s24, 0
    %p203 = por %p201, %p202
    %s205 = sadd.s32 %s204, 1
    %p208 = scmp.eq.s32.totalorder %s18, 3
    %p209 = scmp.ne.s32.totalorder %s204, %s206
    %p210 = scmp.eq.s32.totalorder %s18, 0
    %p211 = por %p209, %p210
    %p212 = scmp.ne.s32.totalorder %s204, %s206
    %p213 = scmp.eq.s32.totalorder %s23, 3
    %p214 = por %p212, %p213
    %p215 = scmp.ne.s32.totalorder %s206, %s207
    %p216 = scmp.eq.s32.totalorder %s23, 0
    %p217 = por %p215, %p216
    %p218 = scmp.ne.s32.totalorder %s206, %s207
    %p219 = scmp.eq.s32.totalorder %s24, 3
    %p220 = por %p218, %p219
    %p222 = scmp.ne.s32.totalorder %s207, %s221
    %p223 = scmp.eq.s32.totalorder %s24, 0
    %p224 = por %p222, %p223
    %s226 = sadd.s32 %s225, 1
    %p229 = scmp.eq.s32.totalorder %s18, 3
    %p230 = scmp.ne.s32.totalorder %s225, %s227
    %p231 = scmp.eq.s32.totalorder %s18, 0
    %p232 = por %p230, %p231
    %p233 = scmp.ne.s32.totalorder %s225, %s227
    %p234 = scmp.eq.s32.totalorder %s23, 3
    %p235 = por %p233, %p234
    %p236 = scmp.ne.s32.totalorder %s227, %s228
    %p237 = scmp.eq.s32.totalorder %s23, 0
    %p238 = por %p236, %p237
    %p239 = scmp.ne.s32.totalorder %s227, %s228
    %p240 = scmp.eq.s32.totalorder %s24, 3
    %p241 = por %p239, %p240
    %p243 = scmp.ne.s32.totalorder %s228, %s242
    %p244 = scmp.eq.s32.totalorder %s24, 0
    %p245 = por %p243, %p244
    %s246 = ssub.s32 %s18, %s25
    %p247 = scmp.eq.s32.totalorder %s246, 0
    %s249 = sadd.s32 %s248, 1
    %s250 = scalar_select %p247, %s248, %s249
    %p253 = pneg %p247
    %p254 = scmp.eq.s32.totalorder %s18, 3
    %p255 = por %p253, %p254
    %p256 = scmp.ne.s32.totalorder %s248, %s251
    %p257 = scmp.eq.s32.totalorder %s18, 0
    %p258 = por %p256, %p257
    %p259 = scmp.ne.s32.totalorder %s248, %s251
    %p260 = scmp.eq.s32.totalorder %s23, 3
    %p261 = por %p259, %p260
    %p262 = scmp.ne.s32.totalorder %s251, %s252
    %p263 = scmp.eq.s32.totalorder %s23, 0
    %p264 = por %p262, %p263
    %p265 = scmp.ne.s32.totalorder %s251, %s252
    %p266 = scmp.eq.s32.totalorder %s24, 3
    %p267 = por %p265, %p266
    %p269 = scmp.ne.s32.totalorder %s252, %s268
    %p270 = scmp.eq.s32.totalorder %s24, 0
    %p271 = por %p269, %p270
    %p272 = scmp.le.s32.totalorder 1, %s18
    %p273 = scmp.lt.s32.totalorder %s18, 5
    %p274 = pnand %p272, %p273
    %p275 = pneg %p274
    // Predicated region
    $region9: #{tpu_custom_call.1} parent=5 // pred_check
      _
    $region10: #{tpu_custom_call.1} parent=5 // pred_check_branch
      %277 = sbr.rel (%p274) target = $region12
    $region11: #{tpu_custom_call.1} parent=5 // pred_region
      %s278 = ssub.s32 %s18, 1
      // Predicated region
      $region13: #{tpu_custom_call.1} parent=11 // pred_check
        %p279 = pneg %p91
      $region14: #{tpu_custom_call.1} parent=11 // pred_check_branch
        %281 = sbr.rel (%p279) target = $region16
      $region15: #{tpu_custom_call.1} parent=11 // pred_region
        _
      $region16: #{tpu_custom_call.1} parent=11 // pred_fallthru
        _
      // Predicated region
      $region17: #{tpu_custom_call.1} parent=11 // pred_check
        %p282 = pneg %p112
      $region18: #{tpu_custom_call.1} parent=11 // pred_check_branch
        %284 = sbr.rel (%p282) target = $region20
      $region19: #{tpu_custom_call.1} parent=11 // pred_region
        _
      $region20: #{tpu_custom_call.1} parent=11 // pred_fallthru
        _
      // Predicated region
      $region21: #{tpu_custom_call.1} parent=11 // pred_check
        %p285 = pneg %p133
      $region22: #{tpu_custom_call.1} parent=11 // pred_check_branch
        %287 = sbr.rel (%p285) target = $region24
      $region23: #{tpu_custom_call.1} parent=11 // pred_region
        _
      $region24: #{tpu_custom_call.1} parent=11 // pred_fallthru
        _
      // Predicated region
      $region25: #{tpu_custom_call.1} parent=11 // pred_check
        %p288 = pneg %p154
      $region26: #{tpu_custom_call.1} parent=11 // pred_check_branch
        %290 = sbr.rel (%p288) target = $region28
      $region27: #{tpu_custom_call.1} parent=11 // pred_region
        _
      $region28: #{tpu_custom_call.1} parent=11 // pred_fallthru
        _
      // Predicated region
      $region29: #{tpu_custom_call.1} parent=11 // pred_check
        %p291 = pneg %p175
      $region30: #{tpu_custom_call.1} parent=11 // pred_check_branch
        %293 = sbr.rel (%p291) target = $region32
      $region31: #{tpu_custom_call.1} parent=11 // pred_region
        _
      $region32: #{tpu_custom_call.1} parent=11 // pred_fallthru
        _
      // Predicated region
      $region33: #{tpu_custom_call.1} parent=11 // pred_check
        %p294 = pneg %p196
      $region34: #{tpu_custom_call.1} parent=11 // pred_check_branch
        %296 = sbr.rel (%p294) target = $region36
      $region35: #{tpu_custom_call.1} parent=11 // pred_region
        _
      $region36: #{tpu_custom_call.1} parent=11 // pred_fallthru
        _
      // Predicated region
      $region37: #{tpu_custom_call.1} parent=11 // pred_check
        %p297 = pneg %p217
      $region38: #{tpu_custom_call.1} parent=11 // pred_check_branch
        %299 = sbr.rel (%p297) target = $region40
      $region39: #{tpu_custom_call.1} parent=11 // pred_region
        _
      $region40: #{tpu_custom_call.1} parent=11 // pred_fallthru
        _
      // Predicated region
      $region41: #{tpu_custom_call.1} parent=11 // pred_check
        %p300 = pneg %p238
      $region42: #{tpu_custom_call.1} parent=11 // pred_check_branch
        %302 = sbr.rel (%p300) target = $region44
      $region43: #{tpu_custom_call.1} parent=11 // pred_region
        _
      $region44: #{tpu_custom_call.1} parent=11 // pred_fallthru
        _
    $region12: #{tpu_custom_call.1} parent=5 // pred_fallthru
      _
    %p303 = scmp.lt.s32.totalorder %s18, 4
    // Predicated region
    $region45: #{tpu_custom_call.1} parent=5 // pred_check
      %p304 = pneg %p303
    $region46: #{tpu_custom_call.1} parent=5 // pred_check_branch
      %306 = sbr.rel (%p304) target = $region48
    $region47: #{tpu_custom_call.1} parent=5 // pred_region
      // Predicated region
      $region49: #{tpu_custom_call.1} parent=47 // pred_check
        %p307 = pneg %p38
      $region50: #{tpu_custom_call.1} parent=47 // pred_check_branch
        %309 = sbr.rel (%p307) target = $region52
      $region51: #{tpu_custom_call.1} parent=47 // pred_region
        %p310 = scmp.lt.s32.totalorder %s18, 3
        %s311 = scalar_select %p310, %s18, 3
        %s312 = smul.addr %s311, 8
        %s313 = scalar_lea.vmem %s0, %s312
      $region52: #{tpu_custom_call.1} parent=47 // pred_fallthru
        _
      // Predicated region
      $region53: #{tpu_custom_call.1} parent=47 // pred_check
        %p314 = pneg %p64
      $region54: #{tpu_custom_call.1} parent=47 // pred_check_branch
        %316 = sbr.rel (%p314) target = $region56
      $region55: #{tpu_custom_call.1} parent=47 // pred_region
        %p317 = scmp.lt.s32.totalorder %s18, 3
        %s318 = scalar_select %p317, %s18, 3
        %s319 = smul.addr %s318, 8
        %s320 = scalar_lea.vmem %s1, %s319
      $region56: #{tpu_custom_call.1} parent=47 // pred_fallthru
        _
    $region48: #{tpu_custom_call.1} parent=5 // pred_fallthru
      _
    %p321 = scmp.le.s32.totalorder 1, %s18
    %p322 = scmp.lt.s32.totalorder %s18, 5
    %p323 = pnand %p321, %p322
    %p324 = pneg %p323
    // Predicated region
    $region57: #{tpu_custom_call.1} parent=5 // pred_check
      _
    $region58: #{tpu_custom_call.1} parent=5 // pred_check_branch
      %326 = sbr.rel (%p323) target = $region60
    $region59: #{tpu_custom_call.1} parent=5 // pred_region
      %s327 = ssub.s32 %s18, 1
      %p328 = scmp.lt.s32.totalorder %s23, 3
      %s329 = scalar_select %p328, %s23, 3
      %s330 = smul.addr %s329, 8
      %s331 = scalar_lea.vmem %s0, %s330
      %p332 = pneg %p44
      %p333 = pneg %p41
      %p334 = scmp.lt.s32.totalorder %s23, 3
      %s335 = scalar_select %p334, %s23, 3
      %s336 = smul.addr %s335, 8
      %s337 = scalar_lea.vmem %s1, %s336
      %p338 = pneg %p70
      %p339 = pneg %p67
      %p340 = pneg %p91
      %p341 = pneg %p88
      %p342 = pneg %p112
      %p343 = pneg %p109
      %p344 = pneg %p133
      %p345 = pneg %p130
      %p346 = pneg %p154
      %p347 = pneg %p151
      %p348 = pneg %p175
      %p349 = pneg %p172
      %p350 = pneg %p196
      %p351 = pneg %p193
      %p352 = pneg %p217
      %p353 = pneg %p214
      %p354 = pneg %p238
      %p355 = pneg %p235
      %p356 = pneg %p264
      %p357 = pneg %p261
      %p358 = scmp.lt.s32.totalorder %s23, 3
      %s359 = scalar_select %p358, %s23, 3
      %s360 = smul.addr %s359, 8
      %s361 = scalar_lea.vmem %s10, %s360
      %p362 = scmp.lt.s32.totalorder %s23, 3
      %s363 = scalar_select %p362, %s23, 3
      %s364 = smul.addr %s363, 8
      %s365 = scalar_lea.vmem %s0, %s364
      %p366 = scmp.lt.s32.totalorder %s23, 3
      %s367 = scalar_select %p366, %s23, 3
      %s368 = smul.addr %s367, 8
      %s369 = scalar_lea.vmem %s1, %s368
      %p370 = scmp.lt.s32.totalorder %s23, 3
      %s371 = scalar_select %p370, %s23, 3
      %s372 = smul.addr %s371, 8
      %s373 = scalar_lea.vmem %s10, %s372
      %v374 = vld [vmem:[%s365] sm:$0xff]
      %v375 = vld [vmem:[%s369] sm:$0xff]
      %v376 = vld [vmem:[%s2] sm:$0xff]
      %v377 = vld [vmem:[%s2 + $0x8] sm:$0xff]
      %v378 = vld [vmem:[%s2 + $0x10] sm:$0xff]
      %vm379 = vcmask 195584
      %v381 = vsel %vm379, %v374, 0
      %383 = vmatprep.subr.mxu0 0.0
      %384 = vmatpush1.msra.mxu0 %v376
      %385 = vmatprep.subr.mxu0 0.0
      %386 = vmatpush1.msra.mxu0 %v377
      %387 = vmatprep.subr.mxu0 0.0
      %388 = vmatpush1.msra.mxu0 %v378
      %389 = vmatprep.subr.mxu0 0.0
      %390 = vmatpush1.msra.mxu0 0.0
      %391 = vmatprep.subr.mxu0 0.0
      %392 = vmatpush1.msra.mxu0 0.0
      %393 = vmatprep.subr.mxu0 0.0
      %394 = vmatpush1.msra.mxu0 0.0
      %395 = vmatprep.subr.mxu0 0.0
      %396 = vmatpush1.msra.mxu0 0.0
      %397 = vmatprep.subr.mxu0 0.0
      %398 = vmatpush1.msra.mxu0 0.0
      %399 = vmatprep.subr.mxu0 0.0
      %400 = vmatpush1.msra.mxu0 0.0
      %401 = vmatprep.subr.mxu0 0.0
      %402 = vmatpush1.msra.mxu0 0.0
      %403 = vmatprep.subr.mxu0 0.0
      %404 = vmatpush1.msra.mxu0 0.0
      %405 = vmatprep.subr.mxu0 0.0
      %406 = vmatpush1.msra.mxu0 0.0
      %407 = vmatprep.subr.mxu0 0.0
      %408 = vmatpush1.msra.mxu0 0.0
      %409 = vmatprep.subr.mxu0 0.0
      %410 = vmatpush1.msra.mxu0 0.0
      %411 = vmatprep.subr.mxu0 0.0
      %412 = vmatpush1.msra.mxu0 0.0
      %413 = vmatprep.subr.mxu0 0.0
      %414 = vmatpush1.msra.mxu0 0.0
      %415 = vmatprep.subr.mxu0 0.0
      %416 = vmatpush1.msra.mxu0 0.0
      %417 = vmatprep.subr.mxu0 0.0
      %418 = vmatpush1.msra.mxu0 0.0
      %419 = vmatprep.subr.mxu0 0.0
      %420 = vmatpush1.msra.mxu0 0.0
      %421 = vmatprep.subr.mxu0 0.0
      %422 = vmatpush1.msra.mxu0 0.0
      %423 = vmatprep.subr.mxu0 0.0
      %424 = vmatpush1.msra.mxu0 0.0
      %425 = vmatprep.subr.mxu0 0.0
      %426 = vmatpush1.msra.mxu0 0.0
      %427 = vmatprep.subr.mxu0 0.0
      %428 = vmatpush1.msra.mxu0 0.0
      %429 = vmatprep.subr.mxu0 0.0
      %430 = vmatpush1.msra.mxu0 0.0
      %431 = vmatprep.subr.mxu0 0.0
      %432 = vmatpush1.msra.mxu0 0.0
      %433 = vmatprep.subr.mxu0 0.0
      %434 = vmatpush1.msra.mxu0 0.0
      %435 = vmatprep.subr.mxu0 0.0
      %436 = vmatpush1.msra.mxu0 0.0
      %437 = vmatprep.subr.mxu0 0.0
      %438 = vmatpush1.msra.mxu0 0.0
      %439 = vmatprep.subr.mxu0 0.0
      %440 = vmatpush1.msra.mxu0 0.0
      %441 = vmatprep.subr.mxu0 0.0
      %442 = vmatpush1.msra.mxu0 0.0
      %443 = vmatprep.subr.mxu0 0.0
      %444 = vmatpush1.msra.mxu0 0.0
      %445 = vmatprep.subr.mxu0 0.0
      %446 = vmatpush1.msra.mxu0 0.0
      %447 = vmatprep.mubr.f32.mxu0 0.0
      %448 = vmatmul.mubr.f32.gmra.mrb[0].mxu0 %v381
      %v449 = vpop.f32.mrb[0].mxu0
      %v450 = vadd.f32 0.0, %v449
      %v451 = vpop.f32.mrb[0].mxu0
      %452 = vdwg.mxu0
      %v453 = vmax.f32 %v450, 0.0
      %vm454 = vcmask 523264
      %v455 = vsel %vm454, %v453, 0.0
      %v456 = vrot.slane %v455, 4
      %v457 = vadd.f32 %v455, %v456
      %v458 = vrot.slane %v457, 2
      %v459 = vadd.f32 %v457, %v458
      %v460 = vrot.slane %v459, 1
      %v461 = vadd.f32 %v459, %v460
      %v462 = vrcp.pop 8.0
      %v463 = vmul.f32 %v461, %v462
      %v464 = vmul.f32 %v453, %v453
      %v465 = vsel %vm454, %v464, 0.0
      %v466 = vrot.slane %v465, 4
      %v467 = vadd.f32 %v465, %v466
      %v468 = vrot.slane %v467, 2
      %v469 = vadd.f32 %v467, %v468
      %v470 = vrot.slane %v469, 1
      %v471 = vadd.f32 %v469, %v470
      %v472 = vmul.f32 %v471, %v462
      %v473 = vmul.f32 %v463, %v463
      %v474 = vsub.f32 %v472, %v473
      %v475 = vmax.f32 %v474, 0.0
      %v476 = vsub.f32 %v453, %v463
      %v477 = vadd.f32 %v475, 1e-05
      %v478 = vrsqrt.pop %v477
      %v479 = vmul.f32 %v476, %v478
      %v480 = vld [vmem:[%s3] sm:$0xff]
      %v481 = vld [vmem:[%s3 + $0x8] sm:$0xff]
      %v482 = vld [vmem:[%s3 + $0x10] sm:$0xff]
      %v483 = vld [vmem:[%s3 + $0x18] sm:$0xff]
      %v484 = vld [vmem:[%s3 + $0x20] sm:$0xff]
      %v485 = vld [vmem:[%s3 + $0x28] sm:$0xff]
      %v486 = vld [vmem:[%s3 + $0x30] sm:$0xff]
      %v487 = vld [vmem:[%s3 + $0x38] sm:$0xff]
      %v488 = vld [vmem:[%s4] sm:$0xf]
      %vm489 = vcmask 31744
      %v491 = vsel %vm489, %v375, 0
      %vm493 = vcmask 1043456
      %v495 = vsel %vm493, %v488, 0
      %497 = vmatprep.subr.mxu0 0.0
      %498 = vmatpush1.msra.mxu0 %v495
      %499 = vmatprep.subr.mxu0 0.0
      %500 = vmatpush1.msra.mxu0 0.0
      %501 = vmatprep.subr.mxu0 0.0
      %502 = vmatpush1.msra.mxu0 0.0
      %503 = vmatprep.subr.mxu0 0.0
      %504 = vmatpush1.msra.mxu0 0.0
      %505 = vmatprep.subr.mxu0 0.0
      %506 = vmatpush1.msra.mxu0 0.0
      %507 = vmatprep.subr.mxu0 0.0
      %508 = vmatpush1.msra.mxu0 0.0
      %509 = vmatprep.subr.mxu0 0.0
      %510 = vmatpush1.msra.mxu0 0.0
      %511 = vmatprep.subr.mxu0 0.0
      %512 = vmatpush1.msra.mxu0 0.0
      %513 = vmatprep.subr.mxu0 0.0
      %514 = vmatpush1.msra.mxu0 0.0
      %515 = vmatprep.subr.mxu0 0.0
      %516 = vmatpush1.msra.mxu0 0.0
      %517 = vmatprep.subr.mxu0 0.0
      %518 = vmatpush1.msra.mxu0 0.0
      %519 = vmatprep.subr.mxu0 0.0
      %520 = vmatpush1.msra.mxu0 0.0
      %521 = vmatprep.subr.mxu0 0.0
      %522 = vmatpush1.msra.mxu0 0.0
      %523 = vmatprep.subr.mxu0 0.0
      %524 = vmatpush1.msra.mxu0 0.0
      %525 = vmatprep.subr.mxu0 0.0
      %526 = vmatpush1.msra.mxu0 0.0
      %527 = vmatprep.subr.mxu0 0.0
      %528 = vmatpush1.msra.mxu0 0.0
      %529 = vmatprep.subr.mxu0 0.0
      %530 = vmatpush1.msra.mxu0 0.0
      %531 = vmatprep.subr.mxu0 0.0
      %532 = vmatpush1.msra.mxu0 0.0
      %533 = vmatprep.subr.mxu0 0.0
      %534 = vmatpush1.msra.mxu0 0.0
      %535 = vmatprep.subr.mxu0 0.0
      %536 = vmatpush1.msra.mxu0 0.0
      %537 = vmatprep.subr.mxu0 0.0
      %538 = vmatpush1.msra.mxu0 0.0
      %539 = vmatprep.subr.mxu0 0.0
      %540 = vmatpush1.msra.mxu0 0.0
      %541 = vmatprep.subr.mxu0 0.0
      %542 = vmatpush1.msra.mxu0 0.0
      %543 = vmatprep.subr.mxu0 0.0
      %544 = vmatpush1.msra.mxu0 0.0
      %545 = vmatprep.subr.mxu0 0.0
      %546 = vmatpush1.msra.mxu0 0.0
      %547 = vmatprep.subr.mxu0 0.0
      %548 = vmatpush1.msra.mxu0 0.0
      %549 = vmatprep.subr.mxu0 0.0
      %550 = vmatpush1.msra.mxu0 0.0
      %551 = vmatprep.subr.mxu0 0.0
      %552 = vmatpush1.msra.mxu0 0.0
      %553 = vmatprep.subr.mxu0 0.0
      %554 = vmatpush1.msra.mxu0 0.0
      %555 = vmatprep.subr.mxu0 0.0
      %556 = vmatpush1.msra.mxu0 0.0
      %557 = vmatprep.subr.mxu0 0.0
      %558 = vmatpush1.msra.mxu0 0.0
      %559 = vmatprep.subr.mxu0 0.0
      %560 = vmatpush1.msra.mxu0 0.0
      %561 = vmatprep.mubr.f32.mxu0 0.0
      %562 = vmatmul.mubr.f32.gmra.mrb[0].mxu0 %v491
      %v563 = vpop.f32.mrb[0].mxu0
      %v564 = vadd.f32 0.0, %v563
      %v565 = vpop.f32.mrb[0].mxu0
      %566 = vdwg.mxu0
      %v568 = vsel %vm454, %v479, 0
      %570 = vmatprep.subr.mxu0 0.0
      %571 = vmatpush1.msra.mxu0 %v480
      %572 = vmatprep.subr.mxu0 0.0
      %573 = vmatpush1.msra.mxu0 %v481
      %574 = vmatprep.subr.mxu0 0.0
      %575 = vmatpush1.msra.mxu0 %v482
      %576 = vmatprep.subr.mxu0 0.0
      %577 = vmatpush1.msra.mxu0 %v483
      %578 = vmatprep.subr.mxu0 0.0
      %579 = vmatpush1.msra.mxu0 %v484
      %580 = vmatprep.subr.mxu0 0.0
      %581 = vmatpush1.msra.mxu0 %v485
      %582 = vmatprep.subr.mxu0 0.0
      %583 = vmatpush1.msra.mxu0 %v486
      %584 = vmatprep.subr.mxu0 0.0
      %585 = vmatpush1.msra.mxu0 %v487
      %586 = vmatprep.subr.mxu0 0.0
      %587 = vmatpush1.msra.mxu0 0.0
      %588 = vmatprep.subr.mxu0 0.0
      %589 = vmatpush1.msra.mxu0 0.0
      %590 = vmatprep.subr.mxu0 0.0
      %591 = vmatpush1.msra.mxu0 0.0
      %592 = vmatprep.subr.mxu0 0.0
      %593 = vmatpush1.msra.mxu0 0.0
      %594 = vmatprep.subr.mxu0 0.0
      %595 = vmatpush1.msra.mxu0 0.0
      %596 = vmatprep.subr.mxu0 0.0
      %597 = vmatpush1.msra.mxu0 0.0
      %598 = vmatprep.subr.mxu0 0.0
      %599 = vmatpush1.msra.mxu0 0.0
      %600 = vmatprep.subr.mxu0 0.0
      %601 = vmatpush1.msra.mxu0 0.0
      %602 = vmatprep.subr.mxu0 0.0
      %603 = vmatpush1.msra.mxu0 0.0
      %604 = vmatprep.subr.mxu0 0.0
      %605 = vmatpush1.msra.mxu0 0.0
      %606 = vmatprep.subr.mxu0 0.0
      %607 = vmatpush1.msra.mxu0 0.0
      %608 = vmatprep.subr.mxu0 0.0
      %609 = vmatpush1.msra.mxu0 0.0
      %610 = vmatprep.subr.mxu0 0.0
      %611 = vmatpush1.msra.mxu0 0.0
      %612 = vmatprep.subr.mxu0 0.0
      %613 = vmatpush1.msra.mxu0 0.0
      %614 = vmatprep.subr.mxu0 0.0
      %615 = vmatpush1.msra.mxu0 0.0
      %616 = vmatprep.subr.mxu0 0.0
      %617 = vmatpush1.msra.mxu0 0.0
      %618 = vmatprep.subr.mxu0 0.0
      %619 = vmatpush1.msra.mxu0 0.0
      %620 = vmatprep.subr.mxu0 0.0
      %621 = vmatpush1.msra.mxu0 0.0
      %622 = vmatprep.subr.mxu0 0.0
      %623 = vmatpush1.msra.mxu0 0.0
      %624 = vmatprep.subr.mxu0 0.0
      %625 = vmatpush1.msra.mxu0 0.0
      %626 = vmatprep.subr.mxu0 0.0
      %627 = vmatpush1.msra.mxu0 0.0
      %628 = vmatprep.subr.mxu0 0.0
      %629 = vmatpush1.msra.mxu0 0.0
      %630 = vmatprep.subr.mxu0 0.0
      %631 = vmatpush1.msra.mxu0 0.0
      %632 = vmatprep.subr.mxu0 0.0
      %633 = vmatpush1.msra.mxu0 0.0
      %634 = vmatprep.mubr.f32.mxu0 0.0
      %635 = vmatmul.mubr.f32.gmra.mrb[0].mxu0 %v568
      %v636 = vpop.f32.mrb[0].mxu0
      %v637 = vadd.f32 %v564, %v636
      %v638 = vpop.f32.mrb[0].mxu0
      %639 = vdwg.mxu0
      %v640 = vld [vmem:[%s5] sm:$0x1]
      %v642 = vlaneseq
      %v643 = vshrl.u32 %v642, 7
      %v644 = vsub.s32 0, %v643
      %v645 = vrot.slane %v640, %v644
      %v647 = vadd.f32 %v637, %v645
      %v648 = vmax.f32 %v647, 0.0
      %vm649 = vcmask 261120
      %v650 = vsel %vm649, %v648, 0.0
      %v651 = vrot.slane %v650, 4
      %v652 = vadd.f32 %v650, %v651
      %v653 = vrot.slane %v652, 2
      %v654 = vadd.f32 %v652, %v653
      %v655 = vrot.slane %v654, 1
      %v656 = vadd.f32 %v654, %v655
      %v657 = vmul.f32 %v656, %v462
      %v658 = vmul.f32 %v648, %v648
      %v659 = vsel %vm649, %v658, 0.0
      %v660 = vrot.slane %v659, 4
      %v661 = vadd.f32 %v659, %v660
      %v662 = vrot.slane %v661, 2
      %v663 = vadd.f32 %v661, %v662
      %v664 = vrot.slane %v663, 1
      %v665 = vadd.f32 %v663, %v664
      %v666 = vmul.f32 %v665, %v462
      %v667 = vmul.f32 %v657, %v657
      %v668 = vsub.f32 %v666, %v667
      %v669 = vmax.f32 %v668, 0.0
      %v670 = vsub.f32 %v648, %v657
      %v671 = vadd.f32 %v669, 1e-05
      %v672 = vrsqrt.pop %v671
      %v673 = vmul.f32 %v670, %v672
      %v674 = vld [vmem:[%s6] sm:$0xff]
      %v675 = vld [vmem:[%s6 + $0x8] sm:$0xff]
      %v676 = vld [vmem:[%s6 + $0x10] sm:$0xff]
      %v677 = vld [vmem:[%s6 + $0x18] sm:$0xff]
      %v678 = vld [vmem:[%s7] sm:$0x1]
      %v680 = vlaneseq
      %v681 = vshrl.u32 %v680, 7
      %v682 = vsub.s32 0, %v681
      %v683 = vrot.slane %v678, %v682
      %v686 = vsel %vm649, %v673, 0
      %688 = vmatprep.subr.mxu0 0.0
      %689 = vmatpush1.msra.mxu0 %v674
      %690 = vmatprep.subr.mxu0 0.0
      %691 = vmatpush1.msra.mxu0 %v675
      %692 = vmatprep.subr.mxu0 0.0
      %693 = vmatpush1.msra.mxu0 %v676
      %694 = vmatprep.subr.mxu0 0.0
      %695 = vmatpush1.msra.mxu0 %v677
      %696 = vmatprep.subr.mxu0 0.0
      %697 = vmatpush1.msra.mxu0 0.0
      %698 = vmatprep.subr.mxu0 0.0
      %699 = vmatpush1.msra.mxu0 0.0
      %700 = vmatprep.subr.mxu0 0.0
      %701 = vmatpush1.msra.mxu0 0.0
      %702 = vmatprep.subr.mxu0 0.0
      %703 = vmatpush1.msra.mxu0 0.0
      %704 = vmatprep.subr.mxu0 0.0
      %705 = vmatpush1.msra.mxu0 0.0
      %706 = vmatprep.subr.mxu0 0.0
      %707 = vmatpush1.msra.mxu0 0.0
      %708 = vmatprep.subr.mxu0 0.0
      %709 = vmatpush1.msra.mxu0 0.0
      %710 = vmatprep.subr.mxu0 0.0
      %711 = vmatpush1.msra.mxu0 0.0
      %712 = vmatprep.subr.mxu0 0.0
      %713 = vmatpush1.msra.mxu0 0.0
      %714 = vmatprep.subr.mxu0 0.0
      %715 = vmatpush1.msra.mxu0 0.0
      %716 = vmatprep.subr.mxu0 0.0
      %717 = vmatpush1.msra.mxu0 0.0
      %718 = vmatprep.subr.mxu0 0.0
      %719 = vmatpush1.msra.mxu0 0.0
      %720 = vmatprep.subr.mxu0 0.0
      %721 = vmatpush1.msra.mxu0 0.0
      %722 = vmatprep.subr.mxu0 0.0
      %723 = vmatpush1.msra.mxu0 0.0
      %724 = vmatprep.subr.mxu0 0.0
      %725 = vmatpush1.msra.mxu0 0.0
      %726 = vmatprep.subr.mxu0 0.0
      %727 = vmatpush1.msra.mxu0 0.0
      %728 = vmatprep.subr.mxu0 0.0
      %729 = vmatpush1.msra.mxu0 0.0
      %730 = vmatprep.subr.mxu0 0.0
      %731 = vmatpush1.msra.mxu0 0.0
      %732 = vmatprep.subr.mxu0 0.0
      %733 = vmatpush1.msra.mxu0 0.0
      %734 = vmatprep.subr.mxu0 0.0
      %735 = vmatpush1.msra.mxu0 0.0
      %736 = vmatprep.subr.mxu0 0.0
      %737 = vmatpush1.msra.mxu0 0.0
      %738 = vmatprep.subr.mxu0 0.0
      %739 = vmatpush1.msra.mxu0 0.0
      %740 = vmatprep.subr.mxu0 0.0
      %741 = vmatpush1.msra.mxu0 0.0
      %742 = vmatprep.subr.mxu0 0.0
      %743 = vmatpush1.msra.mxu0 0.0
      %744 = vmatprep.subr.mxu0 0.0
      %745 = vmatpush1.msra.mxu0 0.0
      %746 = vmatprep.subr.mxu0 0.0
      %747 = vmatpush1.msra.mxu0 0.0
      %748 = vmatprep.subr.mxu0 0.0
      %749 = vmatpush1.msra.mxu0 0.0
      %750 = vmatprep.subr.mxu0 0.0
      %751 = vmatpush1.msra.mxu0 0.0
      %752 = vmatprep.mubr.f32.mxu0 0.0
      %753 = vmatmul.mubr.f32.gmra.mrb[0].mxu0 %v686
      %v754 = vpop.f32.mrb[0].mxu0
      %v755 = vadd.f32 %v683, %v754
      %v756 = vpop.f32.mrb[0].mxu0
      %757 = vdwg.mxu0
      %v758 = vmax.f32 %v755, 0.0
      %v759 = vsel %vm649, %v758, 0.0
      %v760 = vrot.slane %v759, 4
      %v761 = vadd.f32 %v759, %v760
      %v762 = vrot.slane %v761, 2
      %v763 = vadd.f32 %v761, %v762
      %v764 = vrot.slane %v763, 1
      %v765 = vadd.f32 %v763, %v764
      %v766 = vmul.f32 %v765, %v462
      %v767 = vmul.f32 %v758, %v758
      %v768 = vsel %vm649, %v767, 0.0
      %v769 = vrot.slane %v768, 4
      %v770 = vadd.f32 %v768, %v769
      %v771 = vrot.slane %v770, 2
      %v772 = vadd.f32 %v770, %v771
      %v773 = vrot.slane %v772, 1
      %v774 = vadd.f32 %v772, %v773
      %v775 = vmul.f32 %v774, %v462
      %v776 = vmul.f32 %v766, %v766
      %v777 = vsub.f32 %v775, %v776
      %v778 = vmax.f32 %v777, 0.0
      %v779 = vsub.f32 %v758, %v766
      %v780 = vadd.f32 %v778, 1e-05
      %v781 = vrsqrt.pop %v780
      %v782 = vmul.f32 %v779, %v781
      %v783 = vld [vmem:[%s8] sm:$0x1]
      %v785 = vlaneseq
      %v786 = vshrl.u32 %v785, 7
      %v787 = vsub.s32 0, %v786
      %v788 = vrot.slane %v783, %v787
      %v790 = vmul.f32 %v782, %v788
      %v791 = vsel %vm649, %v790, 0.0
      %792 = vadd.xlane.f32.xlu0 %v791
      %v793 = vpop.xlane.xlu0 %792
      %v794 = vld [vmem:[#allocation2] sm:$0x1]
      %v796 = vlaneseq
      %v797 = vshrl.u32 %v796, 7
      %v798 = vsub.s32 0, %v797
      %v799 = vrot.slane %v794, %v798
      %v801 = vadd.f32 %v793, %v799
      %vm802 = vcmask 7168
      %803 = vst.msk [vmem:[%s373] sm:$0xff] %vm802, %v801
      %p804 = scmp.lt.s32.totalorder %s23, 3
      %s805 = scalar_select %p804, %s23, 3
      %s806 = smul.addr %s805, 8
      %s807 = scalar_lea.vmem %s10, %s806
      // Predicated region
      $region61: #{tpu_custom_call.1} parent=59 // pred_check
        %p808 = pneg %p261
      $region62: #{tpu_custom_call.1} parent=59 // pred_check_branch
        %810 = sbr.rel (%p808) target = $region64
      $region63: #{tpu_custom_call.1} parent=59 // pred_region
        _
      $region64: #{tpu_custom_call.1} parent=59 // pred_fallthru
        _
    $region60: #{tpu_custom_call.1} parent=5 // pred_fallthru
      _
    %p811 = scmp.le.s32.totalorder 2, %s18
    // Predicated region
    $region65: #{tpu_custom_call.1} parent=5 // pred_check
      %p812 = pneg %p811
    $region66: #{tpu_custom_call.1} parent=5 // pred_check_branch
      %814 = sbr.rel (%p812) target = $region68
    $region67: #{tpu_custom_call.1} parent=5 // pred_region
      %s815 = ssub.s32 %s18, 2
      // Predicated region
      $region69: #{tpu_custom_call.1} parent=67 // pred_check
        %p816 = pneg %p267
      $region70: #{tpu_custom_call.1} parent=67 // pred_check_branch
        %818 = sbr.rel (%p816) target = $region72
      $region71: #{tpu_custom_call.1} parent=67 // pred_region
        %p819 = scmp.lt.s32.totalorder %s24, 3
        %s820 = scalar_select %p819, %s24, 3
        %s821 = smul.addr %s820, 8
        %s822 = scalar_lea.vmem %s10, %s821
      $region72: #{tpu_custom_call.1} parent=67 // pred_fallthru
        _
    $region68: #{tpu_custom_call.1} parent=5 // pred_fallthru
      _
  $region6: #{tpu_custom_call.1} parent=0 // loop_footer
    %s22 = sadd.s32 1, %s18
  $region7: #{tpu_custom_call.1} parent=0 // loop_footer_branch
    %17 = sbr.rel target = $region3
  $region8: #{tpu_custom_call.1} parent=0 // loop_exit
    _

</llo_original>
